<compile_context>
chip_gen: v7x
topology: tpu7x:2x2x1
jax: 0.10.0
libtpu: 0.0.40
codegen_flags: <defaults>
</compile_context>

<pallas_src>
import jax
import jax.numpy as jnp
from jax import lax
from jax.experimental import pallas as pl
from jax.experimental.pallas import tpu as pltpu

MARGIN = 1.0          # deterministic "parameter" init
MAX_BLOCK_B = 512     # rows per tile (multiple of 8)
MAX_BLOCK_N = 2048    # negatives per tile (multiple of 128)


def _round_up(x: int, m: int) -> int:
    return ((x + m - 1) // m) * m


def kge_loss(pos_scores: jax.Array, neg_scores: jax.Array,
             *, block_b: int | None = None, block_n: int | None = None) -> jax.Array:
    """pos_scores: (B, 1), neg_scores: (B, num_negs) -> scalar f32 loss."""
    B, N = neg_scores.shape
    assert pos_scores.shape == (B, 1)

    if block_b is None:
        block_b = min(MAX_BLOCK_B, _round_up(B, 8))
    if block_n is None:
        block_n = min(MAX_BLOCK_N, _round_up(N, 128))
    assert block_b % 8 == 0 and block_n % 128 == 0

    nb = pl.cdiv(B, block_b)   # B tiles ("parallel")
    nn = pl.cdiv(N, block_n)   # N tiles (inner reduction, "arbitrary")

    # Decide statically whether any masking code needs to exist at all.
    needs_row_mask = (B % block_b) != 0
    needs_col_mask = (N % block_n) != 0

    def kernel(pos_ref, neg_ref, out_ref):
        i = pl.program_id(0)
        j = pl.program_id(1)

        @pl.when(j == 0)
        def _init():
            out_ref[...] = jnp.zeros_like(out_ref)

        pos = pos_ref[...].astype(jnp.float32)      # (block_b, 1)  in-kernel upcast
        neg = neg_ref[...].astype(jnp.float32)      # (block_b, block_n)
        shifted = pos - MARGIN                       # fold margin once per tile
        hinge = jnp.maximum(neg - shifted, 0.0)      # VPU broadcast over lanes

        def accumulate(h):
            # VALU-only partial reduction into the resident lane-dense
            # (8, block_n) accumulator slab; no per-tile XLU scalar reduce.
            out_ref[...] += jnp.sum(h.reshape(block_b // 8, 8, block_n), axis=0)

        if not (needs_row_mask or needs_col_mask):
            # Fully aligned problem: no masking code is ever emitted.
            accumulate(hinge)
        else:
            is_edge = None
            if needs_row_mask:
                is_edge = (i == nb - 1)
            if needs_col_mask:
                e = (j == nn - 1)
                is_edge = e if is_edge is None else (is_edge | e)

            @pl.when(jnp.logical_not(is_edge))
            def _interior():          # hot path: no iota / compare / select
                accumulate(hinge)

            @pl.when(is_edge)
            def _edge():              # rare path: cheap narrow masks
                mask = None
                if needs_row_mask:
                    row = i * block_b + lax.broadcasted_iota(
                        jnp.int32, (block_b, 1), 0)
                    mask = row < B
                if needs_col_mask:
                    col = j * block_n + lax.broadcasted_iota(
                        jnp.int32, (1, block_n), 1)
                    cm = col < N
                    mask = cm if mask is None else (mask & cm)
                # Select AFTER the max: padded-edge garbage (even NaN) -> 0.0.
                accumulate(jnp.where(mask, hinge, 0.0))

    partial = pl.pallas_call(
        kernel,
        out_shape=jax.ShapeDtypeStruct((nb, 8, block_n), jnp.float32),
        grid=(nb, nn),
        in_specs=[
            pl.BlockSpec((block_b, 1), lambda i, j: (i, 0)),
            pl.BlockSpec((block_b, block_n), lambda i, j: (i, j)),
        ],
        # Per-B-tile resident accumulator slab; lane-dense (block_n % 128 == 0),
        # revisited across the inner j (reduction) axis only.
        out_specs=pl.BlockSpec((None, 8, block_n), lambda i, j: (i, 0, 0)),
        compiler_params=pltpu.CompilerParams(
            dimension_semantics=("parallel", "arbitrary"),
            vmem_limit_bytes=32 * 1024 * 1024),
    )(pos_scores, neg_scores)

    # Tiny final reduction + mean scaling (true B*N divisor) stay in XLA.
    return jnp.sum(partial) * (1.0 / float(B * N))


def _reference(pos_scores, neg_scores):
    pos32 = pos_scores.astype(jnp.float32)
    neg32 = neg_scores.astype(jnp.float32)
    return jnp.mean(jnp.maximum(MARGIN + neg32 - pos32, 0.0))


if __name__ == "__main__":
    key = jax.random.PRNGKey(0)
    k1, k2, k3, k4, k5, k6 = jax.random.split(key, 6)

    # Test 1: aligned small shapes, f32 (no masking code emitted at all).
    B, NUM_NEGS = 8, 128
    pos1 = jax.random.normal(k1, (B, 1), dtype=jnp.float32)
    neg1 = jax.random.normal(k2, (B, NUM_NEGS), dtype=jnp.float32)
    loss1 = kge_loss(pos1, neg1)
    jax.block_until_ready(loss1)
    ref1 = _reference(pos1, neg1)
    assert jnp.allclose(loss1, ref1, rtol=1e-5, atol=1e-5), (loss1, ref1)

    # Test 2: unaligned shapes + bf16 inputs (edge-mask path, in-kernel upcast).
    B2, N2 = 10, 200
    pos2 = jax.random.normal(k3, (B2, 1), dtype=jnp.float32).astype(jnp.bfloat16)
    neg2 = jax.random.normal(k4, (B2, N2), dtype=jnp.float32).astype(jnp.bfloat16)
    loss2 = kge_loss(pos2, neg2)
    jax.block_until_ready(loss2)
    ref2 = _reference(pos2, neg2)
    assert jnp.allclose(loss2, ref2, rtol=1e-4, atol=1e-5), (loss2, ref2)

    # Test 3: multi-tile grid (forced small tiles) exercising the interior
    # unmasked fast path plus row-edge, col-edge and corner tiles.
    B3, N3 = 20, 300
    pos3 = jax.random.normal(k5, (B3, 1), dtype=jnp.float32)
    neg3 = jax.random.normal(k6, (B3, N3), dtype=jnp.float32)
    loss3 = kge_loss(pos3, neg3, block_b=8, block_n=128)
    jax.block_until_ready(loss3)
    ref3 = _reference(pos3, neg3)
    assert jnp.allclose(loss3, ref3, rtol=1e-5, atol=1e-5), (loss3, ref3)

    print("KERNEL_OK")
</pallas_src>

<mosaic_0001>
module attributes {stable_mosaic.version = 11 : i64} {
  func.func @kernel(%arg0: i32, %arg1: i32, %arg2: memref<8x1xf32, #tpu.memory_space<vmem>>, %arg3: memref<8x128xf32, #tpu.memory_space<vmem>>, %arg4: memref<1x8x128xf32, #tpu.memory_space<vmem>>) attributes {dimension_semantics = [#tpu.dimension_semantics<parallel>, #tpu.dimension_semantics<arbitrary>], iteration_bounds = array<i64: 1, 1>, scalar_prefetch = 0 : i64, scratch_operands = 0 : i64, tpu.core_type = #tpu.core_type<tc>, window_params = [{transform_indices = @transform_0, window_bounds = array<i64: 8, 1>}, {transform_indices = @transform_1, window_bounds = array<i64: 8, 128>}, {transform_indices = @transform_2, window_bounds = array<i64: 1, 8, 128>}]} {
    %c0_i32 = arith.constant 0 : i32
    %0 = arith.cmpi eq, %arg1, %c0_i32 : i32
    %1 = arith.extui %0 : i1 to i32
    %c0_i32_0 = arith.constant 0 : i32
    %2 = arith.cmpi ne, %1, %c0_i32_0 : i32
    scf.if %2 {
      %cst_12 = arith.constant 0.000000e+00 : f32
      %19 = vector.broadcast %cst_12 : f32 to vector<8x128xf32>
      %c0_13 = arith.constant 0 : index
      %c0_14 = arith.constant 0 : index
      %c0_15 = arith.constant 0 : index
      %20 = vector.load %arg4[%c0_13, %c0_14, %c0_15] : memref<1x8x128xf32, #tpu.memory_space<vmem>>, vector<1x8x128xf32>
      %21 = vector.shape_cast %20 : vector<1x8x128xf32> to vector<8x128xf32>
      %22 = vector.shape_cast %19 : vector<8x128xf32> to vector<1x8x128xf32>
      tpu.vector_store %arg4[%c0_13, %c0_14, %c0_15], %22 {strides = array<i32>} : memref<1x8x128xf32, #tpu.memory_space<vmem>>, vector<1x8x128xf32>,
    } else {
    }
    %c0 = arith.constant 0 : index
    %c0_1 = arith.constant 0 : index
    %3 = vector.load %arg2[%c0, %c0_1] : memref<8x1xf32, #tpu.memory_space<vmem>>, vector<8x1xf32>
    %c0_2 = arith.constant 0 : index
    %c0_3 = arith.constant 0 : index
    %4 = vector.load %arg3[%c0_2, %c0_3] : memref<8x128xf32, #tpu.memory_space<vmem>>, vector<8x128xf32>
    %cst = arith.constant 1.000000e+00 : f32
    %5 = vector.broadcast %cst : f32 to vector<8x1xf32>
    %6 = arith.subf %3, %5 : vector<8x1xf32>
    %7 = vector.broadcast %6 : vector<8x1xf32> to vector<8x128xf32>
    %8 = arith.subf %4, %7 : vector<8x128xf32>
    %cst_4 = arith.constant 0.000000e+00 : f32
    %9 = vector.broadcast %cst_4 : f32 to vector<8x128xf32>
    %10 = arith.maximumf %8, %9 : vector<8x128xf32>
    %c0_5 = arith.constant 0 : index
    %c0_6 = arith.constant 0 : index
    %c0_7 = arith.constant 0 : index
    %11 = vector.load %arg4[%c0_5, %c0_6, %c0_7] : memref<1x8x128xf32, #tpu.memory_space<vmem>>, vector<1x8x128xf32>
    %12 = vector.shape_cast %11 : vector<1x8x128xf32> to vector<8x128xf32>
    %13 = vector.shape_cast %10 : vector<8x128xf32> to vector<1x8x128xf32>
    %cst_8 = arith.constant dense<0.000000e+00> : vector<8x128xf32>
    %14 = vector.multi_reduction <add>, %13, %cst_8 [0] : vector<1x8x128xf32> to vector<8x128xf32>
    %15 = arith.addf %12, %14 : vector<8x128xf32>
    %c0_9 = arith.constant 0 : index
    %c0_10 = arith.constant 0 : index
    %c0_11 = arith.constant 0 : index
    %16 = vector.load %arg4[%c0_9, %c0_10, %c0_11] : memref<1x8x128xf32, #tpu.memory_space<vmem>>, vector<1x8x128xf32>
    %17 = vector.shape_cast %16 : vector<1x8x128xf32> to vector<8x128xf32>
    %18 = vector.shape_cast %15 : vector<8x128xf32> to vector<1x8x128xf32>
    tpu.vector_store %arg4[%c0_9, %c0_10, %c0_11], %18 {strides = array<i32>} : memref<1x8x128xf32, #tpu.memory_space<vmem>>, vector<1x8x128xf32>,
    return
  }
  func.func @transform_0(%arg0: i32, %arg1: i32) -> (i32, i32) {
    %c0_i32 = arith.constant 0 : i32
    %c0_i32_0 = arith.constant 0 : i32
    return %arg0, %c0_i32 : i32, i32
  }
  func.func @transform_1(%arg0: i32, %arg1: i32) -> (i32, i32) {
    %c0_i32 = arith.constant 0 : i32
    return %arg0, %arg1 : i32, i32
  }
  func.func @transform_2(%arg0: i32, %arg1: i32) -> (i32, i32, i32) {
    %c0_i32 = arith.constant 0 : i32
    %c0_i32_0 = arith.constant 0 : i32
    %c0_i32_1 = arith.constant 0 : i32
    return %arg0, %c0_i32, %c0_i32_0 : i32, i32, i32
  }
}

</mosaic_0001>

<llo_original>
// kernel: tpu_custom_call.1
$region0: #{tpu_custom_call.1}
  #allocation0 [shape = 'u32[]', space=smem, size = 0x4, offset = 0x4, fixed_abs, tag = 'smem constant byte address 0x4 - core index']
  #allocation1 [shape = 'u32[144,128]{1,0:T(1,128)}', space=vmem, size = 0x12000, scoped, tag = 'internal scratch']
  %s0 = inlined_call_operand.vmem [shape: f32[8,1], index: 0, kind: input, shape index: {}]
  %s1 = inlined_call_operand.vmem [shape: f32[8,128], index: 1, kind: input, shape index: {}]
  %s2 = inlined_call_operand.hbm [shape: f32[1,8,128], index: 2, kind: output, shape index: {}]
  %s3 = sld [smem:[#allocation0]]
  $region22: #{tpu_custom_call.1} parent=0
    _
  %s5 = ssub.s32 1, %s3
  %s6 = scalar_select 0, %s5, %s3
  $region1: #{tpu_custom_call.1} parent=0
    #allocation2 [shape = 'u8[4096]{0}', space=vmem, size = 0x1000, scoped, tag = 'output window, operand 0, single buffered']
    #allocation3 [shape = 's32[1]{0}', space=sflag, size = 0x4, scoped, tag = 'scoped memory for tpu_custom_call.1']
    %7 = vsyncpa [#allocation3], 0
    // Predicated region
    $region2: #{tpu_custom_call.1} parent=1 // pred_check
      _
    $region3: #{tpu_custom_call.1} parent=1 // pred_check_branch
      %9 = sbr.rel (0) target = $region5
    $region4: #{tpu_custom_call.1} parent=1 // pred_region
      _
    $region5: #{tpu_custom_call.1} parent=1 // pred_fallthru
      _
    // Predicated region
    $region6: #{tpu_custom_call.1} parent=1 // pred_check
      _
    $region7: #{tpu_custom_call.1} parent=1 // pred_check_branch
      %11 = sbr.rel (0) target = $region9
    $region8: #{tpu_custom_call.1} parent=1 // pred_region
      _
    $region9: #{tpu_custom_call.1} parent=1 // pred_fallthru
      _
    %p12 = scmp.eq.s32.totalorder 0, 0
    // Predicated region
    $region10: #{tpu_custom_call.1} parent=1 // pred_check
      %p13 = pneg %p12
    $region11: #{tpu_custom_call.1} parent=1 // pred_check_branch
      %15 = sbr.rel (%p13) target = $region13
    $region12: #{tpu_custom_call.1} parent=1 // pred_region
      %16 = vst [vmem:[#allocation2] sm:$0xff] 0.0
    $region13: #{tpu_custom_call.1} parent=1 // pred_fallthru
      _
    %v17 = vld [vmem:[%s0] sm:$0xff]
    %v18 = vld [vmem:[%s1] sm:$0xff]
    %v19 = vsub.f32 %v17, 1.0
    %21 = vset.pattern.permute.xlu0 0
    %22 = vperm.xlu0 %21, %v19
    %v23 = vpop.permute.xlu0 %22
    %v25 = vsub.f32 %v18, %v23
    %v26 = vmax.f32 %v25, 0.0
    %v27 = vld [vmem:[#allocation2] sm:$0xff]
    %v28 = vadd.f32 %v26, 0.0
    %v29 = vadd.f32 %v27, %v28
    %30 = vst [vmem:[#allocation2] sm:$0xff] %v29
    // Predicated region
    $region14: #{tpu_custom_call.1} parent=1 // pred_check
      _
    $region15: #{tpu_custom_call.1} parent=1 // pred_check_branch
      %32 = sbr.rel (0) target = $region17
    $region16: #{tpu_custom_call.1} parent=1 // pred_region
      %s34 = ssub.s32 128, 128
      %35 = vsyncadd [#allocation3], %s34
      %s37 = sshll.u32 [#allocation2], 4
      %s38 = int_to_ptr.vmem [resolvable:$true] %s37
      %40 = dma.vmem_to_hbm [thread:$0]  %s38, 128, %s2, [#allocation3]
    $region17: #{tpu_custom_call.1} parent=1 // pred_fallthru
      _
    // Predicated region
    $region18: #{tpu_custom_call.1} parent=1 // pred_check
      _
    $region19: #{tpu_custom_call.1} parent=1 // pred_check_branch
      %42 = sbr.rel (0) target = $region21
    $region20: #{tpu_custom_call.1} parent=1 // pred_region
      %43 = dma.done [#allocation3], 128
    $region21: #{tpu_custom_call.1} parent=1 // pred_fallthru
      _
    %44 = vsyncpa [#allocation3], 1

</llo_original>
